<compile_context>
chip_gen: v7x
topology: tpu7x:2x2x1
jax: 0.10.0
libtpu: 0.0.40
codegen_flags: <defaults>
</compile_context>

<pallas_src>
import jax
import jax.numpy as jnp
from jax.experimental import pallas as pl
from jax.experimental.pallas import tpu as pltpu


# ---------------------------------------------------------------------------
# Kernel
# ---------------------------------------------------------------------------
def affine_coupling_kernel(z_ref, bu_ref, mask_ref,
                           wt1_ref, bt1_ref, wt2_ref, bt2_ref,
                           wc1_ref, bc1_ref, wc2_ref, bc2_ref,
                           out_ref):
    z = z_ref[...]                       # (TB, Dp) f32
    bu = bu_ref[...]                     # (TB, Dp) f32
    m = mask_ref[...]                    # (1, Dp)  f32, broadcasts over rows
    s = z + bu                           # hoisted: reused by v1 and epilogue

    mm = wt1_ref.dtype                   # MXU input dtype (bf16 by default)

    # t = tnsl_net((1 - mask) * z): the (1 - mask) factor is pre-folded into
    # the rows of wt1 at prep time, so z feeds the first matmul directly.
    h = jnp.maximum(
        jnp.dot(z.astype(mm), wt1_ref[...],
                preferred_element_type=jnp.float32) + bt1_ref[...], 0.0)
    t = jnp.dot(h.astype(mm), wt2_ref[...],
                preferred_element_type=jnp.float32) + bt2_ref[...]

    # v1 = z*m + t + bu*m
    v1 = m * s + t

    # cmpd_net(v1): Linear -> ReLU -> Linear
    hc = jnp.maximum(
        jnp.dot(v1.astype(mm), wc1_ref[...],
                preferred_element_type=jnp.float32) + bc1_ref[...], 0.0)
    c = jnp.dot(hc.astype(mm), wc2_ref[...],
                preferred_element_type=jnp.float32) + bc2_ref[...]

    # v1 + z*(1-m) + c + bu*(1-m)  ==  z + bu + t + c   (exact cancellation)
    out_ref[...] = s + t + c


# ---------------------------------------------------------------------------
# One-time parameter preparation (hoisted out of the per-call wrapper)
# ---------------------------------------------------------------------------
def _block_diag(w, p):
    """(r, c) -> (p*r, p*c) block-diagonal with p copies of w."""
    if p == 1:
        return w
    r, c = w.shape
    eye = jnp.eye(p, dtype=w.dtype)
    return (eye[:, None, :, None] * w[None, :, None, :]).reshape(p * r, p * c)


def prepare_affine_coupling(mask, params, *, matmul_dtype=jnp.bfloat16):
    """Pack weights once: block-diagonal (row-packed) + (1-mask) fold + bf16."""
    f32 = jnp.float32
    mask_f = jnp.asarray(mask, f32).reshape(-1)
    D = mask_f.shape[0]
    H = params["bt1"].shape[0]

    # Row packing: `pack` logical feature rows side-by-side on the 128 lanes.
    # (B, D) -> (B/pack, pack*D) is a free contiguous reshape; block-diagonal
    # weights make the packed matmuls exactly the per-row matmuls (no padding,
    # no extra HBM traffic, lane-dense unmasked stores).
    pack = 128 // D if (D < 128 and 128 % D == 0) else 1
    Dp, Hp = pack * D, pack * H

    # Fold (1 - mask) into the rows of wt1 (exact for a binary coupling mask).
    wt1_fold = (1.0 - mask_f)[:, None] * jnp.asarray(params["wt1"], f32)

    def bd(w):
        return _block_diag(jnp.asarray(w, f32), pack).astype(matmul_dtype)

    def tile_bias(b):
        return jnp.tile(jnp.asarray(b, f32).reshape(1, -1), (1, pack))

    return dict(
        D=D, H=H, pack=pack, Dp=Dp, Hp=Hp,
        mm_bytes=jnp.dtype(matmul_dtype).itemsize,
        mask=jnp.tile(mask_f.reshape(1, -1), (1, pack)),
        wt1=bd(wt1_fold), bt1=tile_bias(params["bt1"]),
        wt2=bd(params["wt2"]), bt2=tile_bias(params["bt2"]),
        wc1=bd(params["wc1"]), bc1=tile_bias(params["bc1"]),
        wc2=bd(params["wc2"]), bc2=tile_bias(params["bc2"]),
    )


# ---------------------------------------------------------------------------
# Tiling / VMEM budgeting
# ---------------------------------------------------------------------------
_TILE_CANDIDATES = (8192, 4096, 2048, 1024, 512, 256, 128, 64, 32, 16, 8)


def _vmem_budget_bytes():
    # Per-generation scoped-VMEM target: half of physical VMEM, capped so we
    # stay well inside v7x's 64 MiB per-TensorCore even if the query reports
    # a whole-chip number (v5e/v6e: 128 MiB -> 48 MiB cap).
    try:
        phys = int(pltpu.get_tpu_info().vmem_capacity_bytes)
    except Exception:
        phys = 64 << 20
    return int(min(phys // 2, 48 << 20))


def _vmem_need_bytes(tile, Dp, Hp, param_bytes, mm_bytes):
    # Honest accounting for one grid step:
    stream = 3 * 2 * tile * Dp * 4               # z/bu/out f32, double-buffered
    temps = tile * (4 * Dp + 2 * Hp) * 4         # s,t,v1,c (Dp) + h,hc (Hp) f32
    casts = tile * (3 * Dp + 2 * Hp) * mm_bytes  # bf16 copies fed to the MXU
    # 25% margin on live temporaries + compiler-internal scratch/vreg padding.
    return stream + (temps + casts) * 5 // 4 + param_bytes + (4 << 20)


def _pick_batch_tile(rows, need_fn, budget):
    allowed = [t for t in _TILE_CANDIDATES
               if t <= rows and rows % t == 0 and need_fn(t) <= budget]
    if not allowed:
        return min(rows, 8)
    # Prefer an even number of >= 4 grid steps (>= 2 per v7x TensorCore) so
    # the BlockSpec pipeline has DMA/compute overlap on both cores; otherwise
    # relax to >= 2 steps, then take the largest tile that fits.
    for min_steps, want_even in ((4, True), (2, False), (1, False)):
        for t in allowed:  # descending order
            steps = rows // t
            if steps >= min_steps and (not want_even or steps % 2 == 0):
                return t
    return allowed[-1]


# ---------------------------------------------------------------------------
# Per-call wrapper (no padded HBM copies: only free reshapes)
# ---------------------------------------------------------------------------
def affine_coupling_forward(z, bu, prepped, *, batch_tile=None):
    f32 = jnp.float32
    B, D = z.shape
    assert D == prepped["D"], "feature dim mismatch with prepared parameters"
    pack, Dp, Hp = prepped["pack"], prepped["Dp"], prepped["Hp"]

    # Keep the packed row count a multiple of 8 so a sublane-aligned batch
    # tile always exists.  For typical batch sizes this is a no-op (no copy).
    row_quant = 8 * pack
    Bpad = (B + row_quant - 1) // row_quant * row_quant
    z_f = jnp.asarray(z, f32)
    bu_f = jnp.asarray(bu, f32)
    if Bpad != B:
        z_f = jnp.concatenate([z_f, jnp.zeros((Bpad - B, D), f32)], axis=0)
        bu_f = jnp.concatenate([bu_f, jnp.zeros((Bpad - B, D), f32)], axis=0)

    rows = Bpad // pack
    zr = z_f.reshape(rows, Dp)     # free, contiguous reshape (no HBM copy)
    bur = bu_f.reshape(rows, Dp)

    param_bytes = sum(int(prepped[k].size) * int(prepped[k].dtype.itemsize)
                      for k in ("mask", "wt1", "bt1", "wt2", "bt2",
                                "wc1", "bc1", "wc2", "bc2"))
    budget = _vmem_budget_bytes()

    def need(t):
        return _vmem_need_bytes(t, Dp, Hp, param_bytes, prepped["mm_bytes"])

    if batch_tile is None:
        batch_tile = _pick_batch_tile(rows, need, budget)
    assert rows % batch_tile == 0, "rows must be a multiple of the batch tile"

    grid = (rows // batch_tile,)
    data_spec = pl.BlockSpec((batch_tile, Dp), lambda i: (i, 0))
    # Constant-index operands stay whole-array VMEM residents (no per-step
    # re-blocking / double buffering).
    resident = pl.BlockSpec(memory_space=pltpu.MemorySpace.VMEM)
    # NOTE: if a trace on v5e still shows exposed DMA, add
    # pipeline_mode=pl.Buffered(3) to data_spec (costs ~1 tile of VMEM).

    out_packed = pl.pallas_call(
        affine_coupling_kernel,
        out_shape=jax.ShapeDtypeStruct((rows, Dp), f32),
        grid=grid,
        in_specs=[
            data_spec,            # z (row-packed)
            data_spec,            # bu (row-packed)
            resident,             # mask (tiled)
            resident, resident,   # tnsl_net linear_0 (W, b)
            resident, resident,   # tnsl_net linear_1
            resident, resident,   # cmpd_net linear_0
            resident, resident,   # cmpd_net linear_1
        ],
        out_specs=data_spec,
        compiler_params=pltpu.CompilerParams(
            dimension_semantics=("parallel",),
            vmem_limit_bytes=int(min(need(batch_tile), 48 << 20))),
    )(zr, bur, prepped["mask"],
      prepped["wt1"], prepped["bt1"], prepped["wt2"], prepped["bt2"],
      prepped["wc1"], prepped["bc1"], prepped["wc2"], prepped["bc2"])

    out = out_packed.reshape(Bpad, D)   # free reshape back to (B, D)
    return out if Bpad == B else out[:B]


# ---------------------------------------------------------------------------
# Pure-JAX reference (matches the PyTorch forward exactly, f32)
# ---------------------------------------------------------------------------
def affine_coupling_ref(z, bu, mask, params):
    m = mask[None, :]
    u = (1.0 - m) * z
    h = jnp.maximum(u @ params["wt1"] + params["bt1"], 0.0)
    t = h @ params["wt2"] + params["bt2"]
    v1 = z * m + t + bu * m
    hc = jnp.maximum(v1 @ params["wc1"] + params["bc1"], 0.0)
    c = hc @ params["wc2"] + params["bc2"]
    return v1 + z * (1.0 - m) + c + bu * (1.0 - m)


if __name__ == "__main__":
    # Shapes implied by the module: tnsl_layers = cmpd_layers = [D, H, D].
    B, D, H = 256, 32, 64

    key = jax.random.PRNGKey(0)
    ks = jax.random.split(key, 10)

    # Deterministic synthetic parameters (not a checkpoint load).
    params = {
        "wt1": 0.1 * jax.random.normal(ks[0], (D, H), jnp.float32),
        "bt1": 0.01 * jax.random.normal(ks[1], (H,), jnp.float32),
        "wt2": 0.1 * jax.random.normal(ks[2], (H, D), jnp.float32),
        "bt2": 0.01 * jax.random.normal(ks[3], (D,), jnp.float32),
        "wc1": 0.1 * jax.random.normal(ks[4], (D, H), jnp.float32),
        "bc1": 0.01 * jax.random.normal(ks[5], (H,), jnp.float32),
        "wc2": 0.1 * jax.random.normal(ks[6], (H, D), jnp.float32),
        "bc2": 0.01 * jax.random.normal(ks[7], (D,), jnp.float32),
    }
    # Alternating binary coupling mask, as is standard for affine coupling.
    mask = (jnp.arange(D) % 2).astype(jnp.float32)

    z = jax.random.normal(ks[8], (B, D), jnp.float32)
    bu = jax.random.normal(ks[9], (B, D), jnp.float32)

    # One-time parameter packing (hoisted out of the per-call path).
    prepped = prepare_affine_coupling(mask, params, matmul_dtype=jnp.bfloat16)

    out = affine_coupling_forward(z, bu, prepped)
    out = jax.block_until_ready(out)

    ref = affine_coupling_ref(z, bu, mask, params)
    assert out.shape == (B, D)
    # bf16 MXU inputs with f32 accumulation -> loosened tolerance vs f32 ref.
    assert jnp.allclose(out, ref, atol=3e-2, rtol=3e-2), "mismatch vs reference"

    print("KERNEL_OK")
</pallas_src>

<mosaic_0001>
module attributes {stable_mosaic.version = 11 : i64} {
  func.func @affine_coupling_kernel(%arg0: i32, %arg1: memref<16x128xf32, #tpu.memory_space<vmem>>, %arg2: memref<16x128xf32, #tpu.memory_space<vmem>>, %arg3: memref<1x128xf32, #tpu.memory_space<vmem>>, %arg4: memref<128x256xbf16, #tpu.memory_space<vmem>>, %arg5: memref<1x256xf32, #tpu.memory_space<vmem>>, %arg6: memref<256x128xbf16, #tpu.memory_space<vmem>>, %arg7: memref<1x128xf32, #tpu.memory_space<vmem>>, %arg8: memref<128x256xbf16, #tpu.memory_space<vmem>>, %arg9: memref<1x256xf32, #tpu.memory_space<vmem>>, %arg10: memref<256x128xbf16, #tpu.memory_space<vmem>>, %arg11: memref<1x128xf32, #tpu.memory_space<vmem>>, %arg12: memref<16x128xf32, #tpu.memory_space<vmem>>) attributes {dimension_semantics = [#tpu.dimension_semantics<parallel>], iteration_bounds = array<i64: 4>, scalar_prefetch = 0 : i64, scratch_operands = 0 : i64, tpu.core_type = #tpu.core_type<tc>, window_params = [{transform_indices = @transform_0, window_bounds = array<i64: 16, 128>}, {transform_indices = @transform_1, window_bounds = array<i64: 16, 128>}, {pipeline_mode = #tpu.pipeline_mode<synchronous>, transform_indices = @transform_2, window_bounds = array<i64: 1, 128>}, {pipeline_mode = #tpu.pipeline_mode<synchronous>, transform_indices = @transform_3, window_bounds = array<i64: 128, 256>}, {pipeline_mode = #tpu.pipeline_mode<synchronous>, transform_indices = @transform_4, window_bounds = array<i64: 1, 256>}, {pipeline_mode = #tpu.pipeline_mode<synchronous>, transform_indices = @transform_5, window_bounds = array<i64: 256, 128>}, {pipeline_mode = #tpu.pipeline_mode<synchronous>, transform_indices = @transform_6, window_bounds = array<i64: 1, 128>}, {pipeline_mode = #tpu.pipeline_mode<synchronous>, transform_indices = @transform_7, window_bounds = array<i64: 128, 256>}, {pipeline_mode = #tpu.pipeline_mode<synchronous>, transform_indices = @transform_8, window_bounds = array<i64: 1, 256>}, {pipeline_mode = #tpu.pipeline_mode<synchronous>, transform_indices = @transform_9, window_bounds = array<i64: 256, 128>}, {pipeline_mode = #tpu.pipeline_mode<synchronous>, transform_indices = @transform_10, window_bounds = array<i64: 1, 128>}, {transform_indices = @transform_11, window_bounds = array<i64: 16, 128>}]} {
    %c0 = arith.constant 0 : index
    %c0_0 = arith.constant 0 : index
    %0 = vector.load %arg1[%c0, %c0_0] : memref<16x128xf32, #tpu.memory_space<vmem>>, vector<16x128xf32>
    %c0_1 = arith.constant 0 : index
    %c0_2 = arith.constant 0 : index
    %1 = vector.load %arg2[%c0_1, %c0_2] : memref<16x128xf32, #tpu.memory_space<vmem>>, vector<16x128xf32>
    %c0_3 = arith.constant 0 : index
    %c0_4 = arith.constant 0 : index
    %2 = vector.load %arg3[%c0_3, %c0_4] : memref<1x128xf32, #tpu.memory_space<vmem>>, vector<1x128xf32>
    %3 = arith.addf %0, %1 : vector<16x128xf32>
    %4 = arith.truncf %0 : vector<16x128xf32> to vector<16x128xbf16>
    %c0_5 = arith.constant 0 : index
    %c0_6 = arith.constant 0 : index
    %5 = vector.load %arg4[%c0_5, %c0_6] : memref<128x256xbf16, #tpu.memory_space<vmem>>, vector<128x256xbf16>
    %cst = arith.constant dense<0.000000e+00> : vector<16x256xf32>
    %6 = tpu.matmul %4, %5, %cst {dimension_numbers = #tpu.dot_dimension_numbers<[1], [0], [0], [1], [0, 0, 1, 1], [], []>} : vector<16x128xbf16>, vector<128x256xbf16>, vector<16x256xf32> -> vector<16x256xf32>
    %c0_7 = arith.constant 0 : index
    %c0_8 = arith.constant 0 : index
    %7 = vector.load %arg5[%c0_7, %c0_8] : memref<1x256xf32, #tpu.memory_space<vmem>>, vector<1x256xf32>
    %8 = vector.broadcast %7 : vector<1x256xf32> to vector<16x256xf32>
    %9 = arith.addf %6, %8 : vector<16x256xf32>
    %cst_9 = arith.constant 0.000000e+00 : f32
    %10 = vector.broadcast %cst_9 : f32 to vector<16x256xf32>
    %11 = arith.maximumf %9, %10 : vector<16x256xf32>
    %12 = arith.truncf %11 : vector<16x256xf32> to vector<16x256xbf16>
    %c0_10 = arith.constant 0 : index
    %c0_11 = arith.constant 0 : index
    %13 = vector.load %arg6[%c0_10, %c0_11] : memref<256x128xbf16, #tpu.memory_space<vmem>>, vector<256x128xbf16>
    %cst_12 = arith.constant dense<0.000000e+00> : vector<16x128xf32>
    %14 = tpu.matmul %12, %13, %cst_12 {dimension_numbers = #tpu.dot_dimension_numbers<[1], [0], [0], [1], [0, 0, 1, 1], [], []>} : vector<16x256xbf16>, vector<256x128xbf16>, vector<16x128xf32> -> vector<16x128xf32>
    %c0_13 = arith.constant 0 : index
    %c0_14 = arith.constant 0 : index
    %15 = vector.load %arg7[%c0_13, %c0_14] : memref<1x128xf32, #tpu.memory_space<vmem>>, vector<1x128xf32>
    %16 = vector.broadcast %15 : vector<1x128xf32> to vector<16x128xf32>
    %17 = arith.addf %14, %16 : vector<16x128xf32>
    %18 = vector.broadcast %2 : vector<1x128xf32> to vector<16x128xf32>
    %19 = arith.mulf %18, %3 : vector<16x128xf32>
    %20 = arith.addf %19, %17 : vector<16x128xf32>
    %21 = arith.truncf %20 : vector<16x128xf32> to vector<16x128xbf16>
    %c0_15 = arith.constant 0 : index
    %c0_16 = arith.constant 0 : index
    %22 = vector.load %arg8[%c0_15, %c0_16] : memref<128x256xbf16, #tpu.memory_space<vmem>>, vector<128x256xbf16>
    %cst_17 = arith.constant dense<0.000000e+00> : vector<16x256xf32>
    %23 = tpu.matmul %21, %22, %cst_17 {dimension_numbers = #tpu.dot_dimension_numbers<[1], [0], [0], [1], [0, 0, 1, 1], [], []>} : vector<16x128xbf16>, vector<128x256xbf16>, vector<16x256xf32> -> vector<16x256xf32>
    %c0_18 = arith.constant 0 : index
    %c0_19 = arith.constant 0 : index
    %24 = vector.load %arg9[%c0_18, %c0_19] : memref<1x256xf32, #tpu.memory_space<vmem>>, vector<1x256xf32>
    %25 = vector.broadcast %24 : vector<1x256xf32> to vector<16x256xf32>
    %26 = arith.addf %23, %25 : vector<16x256xf32>
    %cst_20 = arith.constant 0.000000e+00 : f32
    %27 = vector.broadcast %cst_20 : f32 to vector<16x256xf32>
    %28 = arith.maximumf %26, %27 : vector<16x256xf32>
    %29 = arith.truncf %28 : vector<16x256xf32> to vector<16x256xbf16>
    %c0_21 = arith.constant 0 : index
    %c0_22 = arith.constant 0 : index
    %30 = vector.load %arg10[%c0_21, %c0_22] : memref<256x128xbf16, #tpu.memory_space<vmem>>, vector<256x128xbf16>
    %cst_23 = arith.constant dense<0.000000e+00> : vector<16x128xf32>
    %31 = tpu.matmul %29, %30, %cst_23 {dimension_numbers = #tpu.dot_dimension_numbers<[1], [0], [0], [1], [0, 0, 1, 1], [], []>} : vector<16x256xbf16>, vector<256x128xbf16>, vector<16x128xf32> -> vector<16x128xf32>
    %c0_24 = arith.constant 0 : index
    %c0_25 = arith.constant 0 : index
    %32 = vector.load %arg11[%c0_24, %c0_25] : memref<1x128xf32, #tpu.memory_space<vmem>>, vector<1x128xf32>
    %33 = vector.broadcast %32 : vector<1x128xf32> to vector<16x128xf32>
    %34 = arith.addf %31, %33 : vector<16x128xf32>
    %35 = arith.addf %3, %17 : vector<16x128xf32>
    %36 = arith.addf %35, %34 : vector<16x128xf32>
    %c0_26 = arith.constant 0 : index
    %c0_27 = arith.constant 0 : index
    %37 = vector.load %arg12[%c0_26, %c0_27] : memref<16x128xf32, #tpu.memory_space<vmem>>, vector<16x128xf32>
    tpu.vector_store %arg12[%c0_26, %c0_27], %36 {strides = array<i32>} : memref<16x128xf32, #tpu.memory_space<vmem>>, vector<16x128xf32>,
    return
  }
  func.func @transform_0(%arg0: i32) -> (i32, i32) {
    %c0_i32 = arith.constant 0 : i32
    %c0_i32_0 = arith.constant 0 : i32
    return %arg0, %c0_i32 : i32, i32
  }
  func.func @transform_1(%arg0: i32) -> (i32, i32) {
    %c0_i32 = arith.constant 0 : i32
    %c0_i32_0 = arith.constant 0 : i32
    return %arg0, %c0_i32 : i32, i32
  }
  func.func @transform_2(%arg0: i32) -> (i32, i32) {
    %c0_i32 = arith.constant 0 : i32
    %c0_i32_0 = arith.constant 0 : i32
    %c0_i32_1 = arith.constant 0 : i32
    return %c0_i32, %c0_i32_0 : i32, i32
  }
  func.func @transform_3(%arg0: i32) -> (i32, i32) {
    %c0_i32 = arith.constant 0 : i32
    %c0_i32_0 = arith.constant 0 : i32
    %c0_i32_1 = arith.constant 0 : i32
    return %c0_i32, %c0_i32_0 : i32, i32
  }
  func.func @transform_4(%arg0: i32) -> (i32, i32) {
    %c0_i32 = arith.constant 0 : i32
    %c0_i32_0 = arith.constant 0 : i32
    %c0_i32_1 = arith.constant 0 : i32
    return %c0_i32, %c0_i32_0 : i32, i32
  }
  func.func @transform_5(%arg0: i32) -> (i32, i32) {
    %c0_i32 = arith.constant 0 : i32
    %c0_i32_0 = arith.constant 0 : i32
    %c0_i32_1 = arith.constant 0 : i32
    return %c0_i32, %c0_i32_0 : i32, i32
  }
  func.func @transform_6(%arg0: i32) -> (i32, i32) {
    %c0_i32 = arith.constant 0 : i32
    %c0_i32_0 = arith.constant 0 : i32
    %c0_i32_1 = arith.constant 0 : i32
    return %c0_i32, %c0_i32_0 : i32, i32
  }
  func.func @transform_7(%arg0: i32) -> (i32, i32) {
    %c0_i32 = arith.constant 0 : i32
    %c0_i32_0 = arith.constant 0 : i32
    %c0_i32_1 = arith.constant 0 : i32
    return %c0_i32, %c0_i32_0 : i32, i32
  }
  func.func @transform_8(%arg0: i32) -> (i32, i32) {
    %c0_i32 = arith.constant 0 : i32
    %c0_i32_0 = arith.constant 0 : i32
    %c0_i32_1 = arith.constant 0 : i32
    return %c0_i32, %c0_i32_0 : i32, i32
  }
  func.func @transform_9(%arg0: i32) -> (i32, i32) {
    %c0_i32 = arith.constant 0 : i32
    %c0_i32_0 = arith.constant 0 : i32
    %c0_i32_1 = arith.constant 0 : i32
    return %c0_i32, %c0_i32_0 : i32, i32
  }
  func.func @transform_10(%arg0: i32) -> (i32, i32) {
    %c0_i32 = arith.constant 0 : i32
    %c0_i32_0 = arith.constant 0 : i32
    %c0_i32_1 = arith.constant 0 : i32
    return %c0_i32, %c0_i32_0 : i32, i32
  }
  func.func @transform_11(%arg0: i32) -> (i32, i32) {
    %c0_i32 = arith.constant 0 : i32
    %c0_i32_0 = arith.constant 0 : i32
    return %arg0, %c0_i32 : i32, i32
  }
}

</mosaic_0001>

<llo_original>
// kernel: tpu_custom_call.1
$region0: #{tpu_custom_call.1}
  #allocation0 [shape = 'u32[]', space=smem, size = 0x4, offset = 0x4, fixed_abs, tag = 'smem constant byte address 0x4 - core index']
  #allocation1 [shape = 'u32[144,128]{1,0:T(1,128)}', space=vmem, size = 0x12000, scoped, tag = 'internal scratch']
  %s0 = inlined_call_operand.hbm [shape: f32[64,128], index: 0, kind: input, shape index: {}]
  %s1 = inlined_call_operand.hbm [shape: f32[64,128], index: 1, kind: input, shape index: {}]
  %s2 = inlined_call_operand.vmem [shape: f32[1,128], index: 2, kind: input, shape index: {}]
  %s3 = inlined_call_operand.hbm [shape: bf16[128,256], index: 3, kind: input, shape index: {}]
  %s4 = inlined_call_operand.vmem [shape: f32[1,256], index: 4, kind: input, shape index: {}]
  %s5 = inlined_call_operand.hbm [shape: bf16[256,128], index: 5, kind: input, shape index: {}]
  %s6 = inlined_call_operand.vmem [shape: f32[1,128], index: 6, kind: input, shape index: {}]
  %s7 = inlined_call_operand.hbm [shape: bf16[128,256], index: 7, kind: input, shape index: {}]
  %s8 = inlined_call_operand.vmem [shape: f32[1,256], index: 8, kind: input, shape index: {}]
  %s9 = inlined_call_operand.hbm [shape: bf16[256,128], index: 9, kind: input, shape index: {}]
  %s10 = inlined_call_operand.vmem [shape: f32[1,128], index: 10, kind: input, shape index: {}]
  %s11 = inlined_call_operand.hbm [shape: f32[64,128], index: 11, kind: output, shape index: {}]
  %s12 = sld [smem:[#allocation0]]
  $region101: #{tpu_custom_call.1} parent=0
    _
  %s14 = ssub.s32 1, %s12
  %s15 = scalar_select 0, %s14, %s12
  $region1: #{tpu_custom_call.1} parent=0
    #allocation2 [shape = 'u8[16384]{0}', space=vmem, size = 0x4000, scoped, tag = 'input window, operand 0']
    #allocation3 [shape = 's32[2]{0}', space=sflag, size = 0x8, scoped, tag = 'scoped memory for tpu_custom_call.1']
    #allocation4 [shape = 's32[2]{0}', space=sflag, size = 0x8, scoped, tag = 'scoped memory for tpu_custom_call.1']
    #allocation5 [shape = 'u8[16384]{0}', space=vmem, size = 0x4000, scoped, tag = 'input window, operand 1']
    #allocation6 [shape = 's32[2]{0}', space=sflag, size = 0x8, scoped, tag = 'scoped memory for tpu_custom_call.1']
    #allocation7 [shape = 'u8[65536]{0}', space=vmem, size = 0x10000, scoped, tag = 'input window, operand 3, single buffered']
    #allocation8 [shape = 'u8[65536]{0}', space=vmem, size = 0x10000, scoped, tag = 'input window, operand 5, single buffered']
    #allocation9 [shape = 's32[1]{0}', space=sflag, size = 0x4, scoped, tag = 'scoped memory for tpu_custom_call.1']
    #allocation10 [shape = 'u8[65536]{0}', space=vmem, size = 0x10000, scoped, tag = 'input window, operand 7, single buffered']
    #allocation11 [shape = 'u8[65536]{0}', space=vmem, size = 0x10000, scoped, tag = 'input window, operand 9, single buffered']
    #allocation12 [shape = 's32[1]{0}', space=sflag, size = 0x4, scoped, tag = 'scoped memory for tpu_custom_call.1']
    #allocation13 [shape = 'u8[16384]{0}', space=vmem, size = 0x4000, scoped, tag = 'output window, operand 0']
    %16 = vsyncpa [#allocation3], 0
    %s17 = scalar_lea.sflag [#allocation3], 1
    %18 = vsyncpa %s17, 0
    %19 = vsyncpa [#allocation6], 0
    %s20 = scalar_lea.sflag [#allocation6], 1
    %21 = vsyncpa %s20, 0
    %22 = vsyncpa [#allocation9], 0
    %23 = vsyncpa [#allocation12], 0
    %24 = vsyncpa [#allocation4], 0
    %s25 = scalar_lea.sflag [#allocation4], 1
    %26 = vsyncpa %s25, 0
    loop: start=0, step=1, limit=6
    $region2: #{tpu_custom_call.1} parent=1 // loop_pre_header
      _
    $region3: #{tpu_custom_call.1} parent=1 // loop_header
      %s28 = sphi 0, %s32
      %p29 = scmp.ge.s32.totalorder %s28, 6
      %s38 = sphi 0, %s40
      %s41 = sphi 0, %s38
      %s42 = sphi 0, %s41
      %s58 = sphi 0, %s42
      %s64 = sphi 0, %s66
      %s67 = sphi 0, %s64
      %s68 = sphi 0, %s67
      %s84 = sphi 0, %s68
      %s88 = sphi 0, %s88
      %s90 = sphi 0, %s88
      %s91 = sphi 0, %s90
      %s105 = sphi 0, %s91
      %s109 = sphi 0, %s109
      %s111 = sphi 0, %s109
      %s112 = sphi 0, %s111
      %s126 = sphi 0, %s112
      %s130 = sphi 0, %s130
      %s132 = sphi 0, %s130
      %s133 = sphi 0, %s132
      %s147 = sphi 0, %s133
      %s151 = sphi 0, %s151
      %s153 = sphi 0, %s151
      %s154 = sphi 0, %s153
      %s168 = sphi 0, %s154
      %s172 = sphi 0, %s172
      %s174 = sphi 0, %s172
      %s175 = sphi 0, %s174
      %s189 = sphi 0, %s175
      %s193 = sphi 0, %s193
      %s195 = sphi 0, %s193
      %s196 = sphi 0, %s195
      %s210 = sphi 0, %s196
      %s214 = sphi 0, %s214
      %s216 = sphi 0, %s214
      %s217 = sphi 0, %s216
      %s231 = sphi 0, %s217
      %s235 = sphi 0, %s235
      %s237 = sphi 0, %s235
      %s238 = sphi 0, %s237
      %s252 = sphi 0, %s238
      %s256 = sphi 0, %s256
      %s258 = sphi 0, %s256
      %s259 = sphi 0, %s258
      %s273 = sphi 0, %s259
      %s279 = sphi 0, %s281
      %s282 = sphi 0, %s279
      %s283 = sphi 0, %s282
      %s299 = sphi 0, %s283
    $region4: #{tpu_custom_call.1} parent=1 // loop_header_branch
      %31 = sbr.rel (%p29) target = $region8
    $region5: #{tpu_custom_call.1} parent=1 // loop_body
      %s33 = ssub.s32 %s28, 1
      %s34 = ssub.s32 %s28, 2
      %s35 = sadd.s32 %s28, 1
      %s36 = ssub.s32 %s28, %s35
      %p37 = scmp.eq.s32.totalorder %s36, 0
      %s39 = sadd.s32 %s38, 1
      %s40 = scalar_select %p37, %s38, %s39
      %p43 = pneg %p37
      %p44 = scmp.eq.s32.totalorder %s28, 3
      %p45 = por %p43, %p44
      %p46 = scmp.ne.s32.totalorder %s38, %s41
      %p47 = scmp.eq.s32.totalorder %s28, 0
      %p48 = por %p46, %p47
      %p49 = scmp.ne.s32.totalorder %s38, %s41
      %p50 = scmp.eq.s32.totalorder %s33, 3
      %p51 = por %p49, %p50
      %p52 = scmp.ne.s32.totalorder %s41, %s42
      %p53 = scmp.eq.s32.totalorder %s33, 0
      %p54 = por %p52, %p53
      %p55 = scmp.ne.s32.totalorder %s41, %s42
      %p56 = scmp.eq.s32.totalorder %s34, 3
      %p57 = por %p55, %p56
      %p59 = scmp.ne.s32.totalorder %s42, %s58
      %p60 = scmp.eq.s32.totalorder %s34, 0
      %p61 = por %p59, %p60
      %s62 = ssub.s32 %s28, %s35
      %p63 = scmp.eq.s32.totalorder %s62, 0
      %s65 = sadd.s32 %s64, 1
      %s66 = scalar_select %p63, %s64, %s65
      %p69 = pneg %p63
      %p70 = scmp.eq.s32.totalorder %s28, 3
      %p71 = por %p69, %p70
      %p72 = scmp.ne.s32.totalorder %s64, %s67
      %p73 = scmp.eq.s32.totalorder %s28, 0
      %p74 = por %p72, %p73
      %p75 = scmp.ne.s32.totalorder %s64, %s67
      %p76 = scmp.eq.s32.totalorder %s33, 3
      %p77 = por %p75, %p76
      %p78 = scmp.ne.s32.totalorder %s67, %s68
      %p79 = scmp.eq.s32.totalorder %s33, 0
      %p80 = por %p78, %p79
      %p81 = scmp.ne.s32.totalorder %s67, %s68
      %p82 = scmp.eq.s32.totalorder %s34, 3
      %p83 = por %p81, %p82
      %p85 = scmp.ne.s32.totalorder %s68, %s84
      %p86 = scmp.eq.s32.totalorder %s34, 0
      %p87 = por %p85, %p86
      %s89 = sadd.s32 %s88, 1
      %p92 = scmp.eq.s32.totalorder %s28, 3
      %p93 = scmp.ne.s32.totalorder %s88, %s90
      %p94 = scmp.eq.s32.totalorder %s28, 0
      %p95 = por %p93, %p94
      %p96 = scmp.ne.s32.totalorder %s88, %s90
      %p97 = scmp.eq.s32.totalorder %s33, 3
      %p98 = por %p96, %p97
      %p99 = scmp.ne.s32.totalorder %s90, %s91
      %p100 = scmp.eq.s32.totalorder %s33, 0
      %p101 = por %p99, %p100
      %p102 = scmp.ne.s32.totalorder %s90, %s91
      %p103 = scmp.eq.s32.totalorder %s34, 3
      %p104 = por %p102, %p103
      %p106 = scmp.ne.s32.totalorder %s91, %s105
      %p107 = scmp.eq.s32.totalorder %s34, 0
      %p108 = por %p106, %p107
      %s110 = sadd.s32 %s109, 1
      %p113 = scmp.eq.s32.totalorder %s28, 3
      %p114 = scmp.ne.s32.totalorder %s109, %s111
      %p115 = scmp.eq.s32.totalorder %s28, 0
      %p116 = por %p114, %p115
      %p117 = scmp.ne.s32.totalorder %s109, %s111
      %p118 = scmp.eq.s32.totalorder %s33, 3
      %p119 = por %p117, %p118
      %p120 = scmp.ne.s32.totalorder %s111, %s112
      %p121 = scmp.eq.s32.totalorder %s33, 0
      %p122 = por %p120, %p121
      %p123 = scmp.ne.s32.totalorder %s111, %s112
      %p124 = scmp.eq.s32.totalorder %s34, 3
      %p125 = por %p123, %p124
      %p127 = scmp.ne.s32.totalorder %s112, %s126
      %p128 = scmp.eq.s32.totalorder %s34, 0
      %p129 = por %p127, %p128
      %s131 = sadd.s32 %s130, 1
      %p134 = scmp.eq.s32.totalorder %s28, 3
      %p135 = scmp.ne.s32.totalorder %s130, %s132
      %p136 = scmp.eq.s32.totalorder %s28, 0
      %p137 = por %p135, %p136
      %p138 = scmp.ne.s32.totalorder %s130, %s132
      %p139 = scmp.eq.s32.totalorder %s33, 3
      %p140 = por %p138, %p139
      %p141 = scmp.ne.s32.totalorder %s132, %s133
      %p142 = scmp.eq.s32.totalorder %s33, 0
      %p143 = por %p141, %p142
      %p144 = scmp.ne.s32.totalorder %s132, %s133
      %p145 = scmp.eq.s32.totalorder %s34, 3
      %p146 = por %p144, %p145
      %p148 = scmp.ne.s32.totalorder %s133, %s147
      %p149 = scmp.eq.s32.totalorder %s34, 0
      %p150 = por %p148, %p149
      %s152 = sadd.s32 %s151, 1
      %p155 = scmp.eq.s32.totalorder %s28, 3
      %p156 = scmp.ne.s32.totalorder %s151, %s153
      %p157 = scmp.eq.s32.totalorder %s28, 0
      %p158 = por %p156, %p157
      %p159 = scmp.ne.s32.totalorder %s151, %s153
      %p160 = scmp.eq.s32.totalorder %s33, 3
      %p161 = por %p159, %p160
      %p162 = scmp.ne.s32.totalorder %s153, %s154
      %p163 = scmp.eq.s32.totalorder %s33, 0
      %p164 = por %p162, %p163
      %p165 = scmp.ne.s32.totalorder %s153, %s154
      %p166 = scmp.eq.s32.totalorder %s34, 3
      %p167 = por %p165, %p166
      %p169 = scmp.ne.s32.totalorder %s154, %s168
      %p170 = scmp.eq.s32.totalorder %s34, 0
      %p171 = por %p169, %p170
      %s173 = sadd.s32 %s172, 1
      %p176 = scmp.eq.s32.totalorder %s28, 3
      %p177 = scmp.ne.s32.totalorder %s172, %s174
      %p178 = scmp.eq.s32.totalorder %s28, 0
      %p179 = por %p177, %p178
      %p180 = scmp.ne.s32.totalorder %s172, %s174
      %p181 = scmp.eq.s32.totalorder %s33, 3
      %p182 = por %p180, %p181
      %p183 = scmp.ne.s32.totalorder %s174, %s175
      %p184 = scmp.eq.s32.totalorder %s33, 0
      %p185 = por %p183, %p184
      %p186 = scmp.ne.s32.totalorder %s174, %s175
      %p187 = scmp.eq.s32.totalorder %s34, 3
      %p188 = por %p186, %p187
      %p190 = scmp.ne.s32.totalorder %s175, %s189
      %p191 = scmp.eq.s32.totalorder %s34, 0
      %p192 = por %p190, %p191
      %s194 = sadd.s32 %s193, 1
      %p197 = scmp.eq.s32.totalorder %s28, 3
      %p198 = scmp.ne.s32.totalorder %s193, %s195
      %p199 = scmp.eq.s32.totalorder %s28, 0
      %p200 = por %p198, %p199
      %p201 = scmp.ne.s32.totalorder %s193, %s195
      %p202 = scmp.eq.s32.totalorder %s33, 3
      %p203 = por %p201, %p202
      %p204 = scmp.ne.s32.totalorder %s195, %s196
      %p205 = scmp.eq.s32.totalorder %s33, 0
      %p206 = por %p204, %p205
      %p207 = scmp.ne.s32.totalorder %s195, %s196
      %p208 = scmp.eq.s32.totalorder %s34, 3
      %p209 = por %p207, %p208
      %p211 = scmp.ne.s32.totalorder %s196, %s210
      %p212 = scmp.eq.s32.totalorder %s34, 0
      %p213 = por %p211, %p212
      %s215 = sadd.s32 %s214, 1
      %p218 = scmp.eq.s32.totalorder %s28, 3
      %p219 = scmp.ne.s32.totalorder %s214, %s216
      %p220 = scmp.eq.s32.totalorder %s28, 0
      %p221 = por %p219, %p220
      %p222 = scmp.ne.s32.totalorder %s214, %s216
      %p223 = scmp.eq.s32.totalorder %s33, 3
      %p224 = por %p222, %p223
      %p225 = scmp.ne.s32.totalorder %s216, %s217
      %p226 = scmp.eq.s32.totalorder %s33, 0
      %p227 = por %p225, %p226
      %p228 = scmp.ne.s32.totalorder %s216, %s217
      %p229 = scmp.eq.s32.totalorder %s34, 3
      %p230 = por %p228, %p229
      %p232 = scmp.ne.s32.totalorder %s217, %s231
      %p233 = scmp.eq.s32.totalorder %s34, 0
      %p234 = por %p232, %p233
      %s236 = sadd.s32 %s235, 1
      %p239 = scmp.eq.s32.totalorder %s28, 3
      %p240 = scmp.ne.s32.totalorder %s235, %s237
      %p241 = scmp.eq.s32.totalorder %s28, 0
      %p242 = por %p240, %p241
      %p243 = scmp.ne.s32.totalorder %s235, %s237
      %p244 = scmp.eq.s32.totalorder %s33, 3
      %p245 = por %p243, %p244
      %p246 = scmp.ne.s32.totalorder %s237, %s238
      %p247 = scmp.eq.s32.totalorder %s33, 0
      %p248 = por %p246, %p247
      %p249 = scmp.ne.s32.totalorder %s237, %s238
      %p250 = scmp.eq.s32.totalorder %s34, 3
      %p251 = por %p249, %p250
      %p253 = scmp.ne.s32.totalorder %s238, %s252
      %p254 = scmp.eq.s32.totalorder %s34, 0
      %p255 = por %p253, %p254
      %s257 = sadd.s32 %s256, 1
      %p260 = scmp.eq.s32.totalorder %s28, 3
      %p261 = scmp.ne.s32.totalorder %s256, %s258
      %p262 = scmp.eq.s32.totalorder %s28, 0
      %p263 = por %p261, %p262
      %p264 = scmp.ne.s32.totalorder %s256, %s258
      %p265 = scmp.eq.s32.totalorder %s33, 3
      %p266 = por %p264, %p265
      %p267 = scmp.ne.s32.totalorder %s258, %s259
      %p268 = scmp.eq.s32.totalorder %s33, 0
      %p269 = por %p267, %p268
      %p270 = scmp.ne.s32.totalorder %s258, %s259
      %p271 = scmp.eq.s32.totalorder %s34, 3
      %p272 = por %p270, %p271
      %p274 = scmp.ne.s32.totalorder %s259, %s273
      %p275 = scmp.eq.s32.totalorder %s34, 0
      %p276 = por %p274, %p275
      %s277 = ssub.s32 %s28, %s35
      %p278 = scmp.eq.s32.totalorder %s277, 0
      %s280 = sadd.s32 %s279, 1
      %s281 = scalar_select %p278, %s279, %s280
      %p284 = pneg %p278
      %p285 = scmp.eq.s32.totalorder %s28, 3
      %p286 = por %p284, %p285
      %p287 = scmp.ne.s32.totalorder %s279, %s282
      %p288 = scmp.eq.s32.totalorder %s28, 0
      %p289 = por %p287, %p288
      %p290 = scmp.ne.s32.totalorder %s279, %s282
      %p291 = scmp.eq.s32.totalorder %s33, 3
      %p292 = por %p290, %p291
      %p293 = scmp.ne.s32.totalorder %s282, %s283
      %p294 = scmp.eq.s32.totalorder %s33, 0
      %p295 = por %p293, %p294
      %p296 = scmp.ne.s32.totalorder %s282, %s283
      %p297 = scmp.eq.s32.totalorder %s34, 3
      %p298 = por %p296, %p297
      %p300 = scmp.ne.s32.totalorder %s283, %s299
      %p301 = scmp.eq.s32.totalorder %s34, 0
      %p302 = por %p300, %p301
      %p303 = scmp.le.s32.totalorder 1, %s28
      %p304 = scmp.lt.s32.totalorder %s28, 5
      %p305 = pnand %p303, %p304
      %p306 = pneg %p305
      // Predicated region
      $region9: #{tpu_custom_call.1} parent=5 // pred_check
        _
      $region10: #{tpu_custom_call.1} parent=5 // pred_check_branch
        %308 = sbr.rel (%p305) target = $region12
      $region11: #{tpu_custom_call.1} parent=5 // pred_region
        %s309 = ssub.s32 %s28, 1
        // Predicated region
        $region13: #{tpu_custom_call.1} parent=11 // pred_check
          %p310 = pneg %p101
        $region14: #{tpu_custom_call.1} parent=11 // pred_check_branch
          %312 = sbr.rel (%p310) target = $region16
        $region15: #{tpu_custom_call.1} parent=11 // pred_region
          _
        $region16: #{tpu_custom_call.1} parent=11 // pred_fallthru
          _
        // Predicated region
        $region17: #{tpu_custom_call.1} parent=11 // pred_check
          %p313 = pneg %p122
        $region18: #{tpu_custom_call.1} parent=11 // pred_check_branch
          %315 = sbr.rel (%p313) target = $region20
        $region19: #{tpu_custom_call.1} parent=11 // pred_region
          %s317 = ssub.s32 2048, 2048
          %318 = vsyncadd [#allocation6], %s317
          %s319 = sshll.u32 [#allocation7], 4
          %s320 = int_to_ptr.vmem [resolvable:$true] %s319
          %325 = dma.hbm_to_vmem [thread:$0]  %s3, 2048, %s320, [#allocation6], 128, 128, 8
        $region20: #{tpu_custom_call.1} parent=11 // pred_fallthru
          _
        // Predicated region
        $region21: #{tpu_custom_call.1} parent=11 // pred_check
          %p326 = pneg %p143
        $region22: #{tpu_custom_call.1} parent=11 // pred_check_branch
          %328 = sbr.rel (%p326) target = $region24
        $region23: #{tpu_custom_call.1} parent=11 // pred_region
          _
        $region24: #{tpu_custom_call.1} parent=11 // pred_fallthru
          _
        // Predicated region
        $region25: #{tpu_custom_call.1} parent=11 // pred_check
          %p329 = pneg %p164
        $region26: #{tpu_custom_call.1} parent=11 // pred_check_branch
          %331 = sbr.rel (%p329) target = $region28
        $region27: #{tpu_custom_call.1} parent=11 // pred_region
          %s333 = ssub.s32 2048, 2048
          %334 = vsyncadd [#allocation9], %s333
          %s335 = sshll.u32 [#allocation8], 4
          %s336 = int_to_ptr.vmem [resolvable:$true] %s335
          %341 = dma.hbm_to_vmem [thread:$0]  %s5, 2048, %s336, [#allocation9], 64, 64, 4
        $region28: #{tpu_custom_call.1} parent=11 // pred_fallthru
          _
        // Predicated region
        $region29: #{tpu_custom_call.1} parent=11 // pred_check
          %p342 = pneg %p185
        $region30: #{tpu_custom_call.1} parent=11 // pred_check_branch
          %344 = sbr.rel (%p342) target = $region32
        $region31: #{tpu_custom_call.1} parent=11 // pred_region
          _
        $region32: #{tpu_custom_call.1} parent=11 // pred_fallthru
          _
        // Predicated region
        $region33: #{tpu_custom_call.1} parent=11 // pred_check
          %p345 = pneg %p206
        $region34: #{tpu_custom_call.1} parent=11 // pred_check_branch
          %347 = sbr.rel (%p345) target = $region36
        $region35: #{tpu_custom_call.1} parent=11 // pred_region
          %s349 = ssub.s32 2048, 2048
          %350 = vsyncadd [#allocation9], %s349
          %s351 = sshll.u32 [#allocation10], 4
          %s352 = int_to_ptr.vmem [resolvable:$true] %s351
          %357 = dma.hbm_to_vmem [thread:$0]  %s7, 2048, %s352, [#allocation9], 128, 128, 8
        $region36: #{tpu_custom_call.1} parent=11 // pred_fallthru
          _
        // Predicated region
        $region37: #{tpu_custom_call.1} parent=11 // pred_check
          %p358 = pneg %p227
        $region38: #{tpu_custom_call.1} parent=11 // pred_check_branch
          %360 = sbr.rel (%p358) target = $region40
        $region39: #{tpu_custom_call.1} parent=11 // pred_region
          _
        $region40: #{tpu_custom_call.1} parent=11 // pred_fallthru
          _
        // Predicated region
        $region41: #{tpu_custom_call.1} parent=11 // pred_check
          %p361 = pneg %p248
        $region42: #{tpu_custom_call.1} parent=11 // pred_check_branch
          %363 = sbr.rel (%p361) target = $region44
        $region43: #{tpu_custom_call.1} parent=11 // pred_region
          %s365 = ssub.s32 2048, 2048
          %366 = vsyncadd [#allocation12], %s365
          %s367 = sshll.u32 [#allocation11], 4
          %s368 = int_to_ptr.vmem [resolvable:$true] %s367
          %373 = dma.hbm_to_vmem [thread:$0]  %s9, 2048, %s368, [#allocation12], 64, 64, 4
        $region44: #{tpu_custom_call.1} parent=11 // pred_fallthru
          _
        // Predicated region
        $region45: #{tpu_custom_call.1} parent=11 // pred_check
          %p374 = pneg %p269
        $region46: #{tpu_custom_call.1} parent=11 // pred_check_branch
          %376 = sbr.rel (%p374) target = $region48
        $region47: #{tpu_custom_call.1} parent=11 // pred_region
          _
        $region48: #{tpu_custom_call.1} parent=11 // pred_fallthru
          _
      $region12: #{tpu_custom_call.1} parent=5 // pred_fallthru
        _
      %p377 = scmp.lt.s32.totalorder %s28, 4
      // Predicated region
      $region49: #{tpu_custom_call.1} parent=5 // pred_check
        %p378 = pneg %p377
      $region50: #{tpu_custom_call.1} parent=5 // pred_check_branch
        %380 = sbr.rel (%p378) target = $region52
      $region51: #{tpu_custom_call.1} parent=5 // pred_region
        // Predicated region
        $region53: #{tpu_custom_call.1} parent=51 // pred_check
          %p381 = pneg %p48
        $region54: #{tpu_custom_call.1} parent=51 // pred_check_branch
          %383 = sbr.rel (%p381) target = $region56
        $region55: #{tpu_custom_call.1} parent=51 // pred_region
          %s384 = sand.u32 %s38, 1
          %s385 = scalar_lea.sflag [#allocation3], %s384
          %s386 = sand.u32 %s38, 1
          %s387 = smul.addr %s386, 16
          %s388 = scalar_lea.vmem [#allocation2], %s387
          %s389 = smul.u32 2, %s28
          %s391 = ssub.s32 256, 256
          %392 = vsyncadd %s385, %s391
          %s393 = smul.addr %s389, 128
          %s394 = scalar_lea.hbm %s0, %s393
          %s395 = sshll.u32 %s388, 4
          %s396 = int_to_ptr.vmem [resolvable:$true] %s395
          %401 = dma.hbm_to_vmem [thread:$0]  %s394, 256, %s396, %s385, 128, 128, 8
        $region56: #{tpu_custom_call.1} parent=51 // pred_fallthru
          _
        // Predicated region
        $region57: #{tpu_custom_call.1} parent=51 // pred_check
          %p402 = pneg %p74
        $region58: #{tpu_custom_call.1} parent=51 // pred_check_branch
          %404 = sbr.rel (%p402) target = $region60
        $region59: #{tpu_custom_call.1} parent=51 // pred_region
          %s405 = sand.u32 %s28, 1
          %s406 = scalar_lea.sflag [#allocation6], %s405
          %s407 = sand.u32 %s64, 1
          %s408 = smul.addr %s407, 16
          %s409 = scalar_lea.vmem [#allocation5], %s408
          %s410 = smul.u32 2, %s28
          %s412 = ssub.s32 256, 256
          %413 = vsyncadd %s406, %s412
          %s414 = smul.addr %s410, 128
          %s415 = scalar_lea.hbm %s1, %s414
          %s416 = sshll.u32 %s409, 4
          %s417 = int_to_ptr.vmem [resolvable:$true] %s416
          %422 = dma.hbm_to_vmem [thread:$0]  %s415, 256, %s417, %s406, 128, 128, 8
        $region60: #{tpu_custom_call.1} parent=51 // pred_fallthru
          _
      $region52: #{tpu_custom_call.1} parent=5 // pred_fallthru
        _
      %p423 = scmp.le.s32.totalorder 1, %s28
      %p424 = scmp.lt.s32.totalorder %s28, 5
      %p425 = pnand %p423, %p424
      %p426 = pneg %p425
      // Predicated region
      $region61: #{tpu_custom_call.1} parent=5 // pred_check
        _
      $region62: #{tpu_custom_call.1} parent=5 // pred_check_branch
        %428 = sbr.rel (%p425) target = $region64
      $region63: #{tpu_custom_call.1} parent=5 // pred_region
        %s429 = ssub.s32 %s28, 1
        %s430 = sand.u32 %s41, 1
        %s431 = scalar_lea.sflag [#allocation3], %s430
        %s432 = sand.u32 %s41, 1
        %s433 = smul.addr %s432, 16
        %s434 = scalar_lea.vmem [#allocation2], %s433
        // Predicated region
        $region65: #{tpu_custom_call.1} parent=63 // pred_check
          %p435 = pneg %p54
        $region66: #{tpu_custom_call.1} parent=63 // pred_check_branch
          %437 = sbr.rel (%p435) target = $region68
        $region67: #{tpu_custom_call.1} parent=63 // pred_region
          %438 = dma.done %s431, 256
        $region68: #{tpu_custom_call.1} parent=63 // pred_fallthru
          _
        %s439 = sand.u32 %s33, 1
        %s440 = scalar_lea.sflag [#allocation6], %s439
        %s441 = sand.u32 %s67, 1
        %s442 = smul.addr %s441, 16
        %s443 = scalar_lea.vmem [#allocation5], %s442
        // Predicated region
        $region69: #{tpu_custom_call.1} parent=63 // pred_check
          %p444 = pneg %p80
        $region70: #{tpu_custom_call.1} parent=63 // pred_check_branch
          %446 = sbr.rel (%p444) target = $region72
        $region71: #{tpu_custom_call.1} parent=63 // pred_region
          %447 = dma.done %s440, 256
        $region72: #{tpu_custom_call.1} parent=63 // pred_fallthru
          _
        // Predicated region
        $region73: #{tpu_custom_call.1} parent=63 // pred_check
          %p448 = pneg %p122
        $region74: #{tpu_custom_call.1} parent=63 // pred_check_branch
          %450 = sbr.rel (%p448) target = $region76
        $region75: #{tpu_custom_call.1} parent=63 // pred_region
          %451 = dma.done [#allocation6], 2048
        $region76: #{tpu_custom_call.1} parent=63 // pred_fallthru
          _
        // Predicated region
        $region77: #{tpu_custom_call.1} parent=63 // pred_check
          %p452 = pneg %p164
        $region78: #{tpu_custom_call.1} parent=63 // pred_check_branch
          %454 = sbr.rel (%p452) target = $region80
        $region79: #{tpu_custom_call.1} parent=63 // pred_region
          %455 = dma.done [#allocation9], 2048
        $region80: #{tpu_custom_call.1} parent=63 // pred_fallthru
          _
        // Predicated region
        $region81: #{tpu_custom_call.1} parent=63 // pred_check
          %p456 = pneg %p206
        $region82: #{tpu_custom_call.1} parent=63 // pred_check_branch
          %458 = sbr.rel (%p456) target = $region84
        $region83: #{tpu_custom_call.1} parent=63 // pred_region
          %459 = dma.done [#allocation9], 2048
        $region84: #{tpu_custom_call.1} parent=63 // pred_fallthru
          _
        // Predicated region
        $region85: #{tpu_custom_call.1} parent=63 // pred_check
          %p460 = pneg %p248
        $region86: #{tpu_custom_call.1} parent=63 // pred_check_branch
          %462 = sbr.rel (%p460) target = $region88
        $region87: #{tpu_custom_call.1} parent=63 // pred_region
          %463 = dma.done [#allocation12], 2048
        $region88: #{tpu_custom_call.1} parent=63 // pred_fallthru
          _
        %s464 = sand.u32 %s41, 1
        %s465 = scalar_lea.sflag [#allocation3], %s464
        %s466 = sand.u32 %s41, 1
        %s467 = smul.addr %s466, 16
        %s468 = scalar_lea.vmem [#allocation2], %s467
        %p469 = pneg %p54
        %p470 = pneg %p51
        %s471 = sand.u32 %s33, 1
        %s472 = scalar_lea.sflag [#allocation6], %s471
        %s473 = sand.u32 %s67, 1
        %s474 = smul.addr %s473, 16
        %s475 = scalar_lea.vmem [#allocation5], %s474
        %p476 = pneg %p80
        %p477 = pneg %p77
        %p478 = pneg %p101
        %p479 = pneg %p98
        %p480 = pneg %p122
        %p481 = pneg %p119
        %p482 = pneg %p143
        %p483 = pneg %p140
        %p484 = pneg %p164
        %p485 = pneg %p161
        %p486 = pneg %p185
        %p487 = pneg %p182
        %p488 = pneg %p206
        %p489 = pneg %p203
        %p490 = pneg %p227
        %p491 = pneg %p224
        %p492 = pneg %p248
        %p493 = pneg %p245
        %p494 = pneg %p269
        %p495 = pneg %p266
        %p496 = pneg %p295
        %p497 = pneg %p292
        %s498 = sand.u32 %s282, 1
        %s499 = scalar_lea.sflag [#allocation4], %s498
        %s500 = sand.u32 %s282, 1
        %s501 = smul.addr %s500, 16
        %s502 = scalar_lea.vmem [#allocation13], %s501
        %s503 = smul.u32 2, %s33
        %s504 = smul.u32 2, %s33
        %s505 = smul.u32 2, %s33
        %v507 = vld [vmem:[%s434] sm:$0xff]
        %v508 = vld [vmem:[%s434 + $0x8] sm:$0xff]
        %v509 = vld [vmem:[%s443] sm:$0xff]
        %v510 = vld [vmem:[%s443 + $0x8] sm:$0xff]
        %v511 = vld [vmem:[%s2] sm:$0x1]
        %v512 = vadd.f32 %v507, %v509
        %v513 = vadd.f32 %v508, %v510
        %v514 = vpack.c.bf16 %v508, %v507
        %v515 = vld [vmem:[#allocation7] sm:$0xff]
        %v516 = vld [vmem:[#allocation7 + $0x8] sm:$0xff]
        %v517 = vld [vmem:[#allocation7 + $0x10] sm:$0xff]
        %v518 = vld [vmem:[#allocation7 + $0x18] sm:$0xff]
        %v519 = vld [vmem:[#allocation7 + $0x20] sm:$0xff]
        %v520 = vld [vmem:[#allocation7 + $0x28] sm:$0xff]
        %v521 = vld [vmem:[#allocation7 + $0x30] sm:$0xff]
        %v522 = vld [vmem:[#allocation7 + $0x38] sm:$0xff]
        %v523 = vld [vmem:[#allocation7 + $0x40] sm:$0xff]
        %v524 = vld [vmem:[#allocation7 + $0x48] sm:$0xff]
        %v525 = vld [vmem:[#allocation7 + $0x50] sm:$0xff]
        %v526 = vld [vmem:[#allocation7 + $0x58] sm:$0xff]
        %v527 = vld [vmem:[#allocation7 + $0x60] sm:$0xff]
        %v528 = vld [vmem:[#allocation7 + $0x68] sm:$0xff]
        %v529 = vld [vmem:[#allocation7 + $0x70] sm:$0xff]
        %v530 = vld [vmem:[#allocation7 + $0x78] sm:$0xff]
        %v531 = vld [vmem:[%s4] sm:$0x3]
        %v533 = vlaneseq
        %v534 = vshrl.u32 %v533, 7
        %v535 = vsub.s32 0, %v534
        %v536 = vrot.slane %v531, %v535
        %v537 = vlaneseq
        %v538 = vshrl.u32 %v537, 7
        %v539 = vsub.s32 1, %v538
        %v540 = vrot.slane %v531, %v539
        %v559 = vunpack.c.l.b16 %v515
        %v560 = vunpack.c.h.b16 %v515
        %v561 = vunpack.c.l.b16 %v516
        %v562 = vunpack.c.h.b16 %v516
        %v563 = vunpack.c.l.b16 %v517
        %v564 = vunpack.c.h.b16 %v517
        %v565 = vunpack.c.l.b16 %v518
        %v566 = vunpack.c.h.b16 %v518
        %v567 = vunpack.c.l.b16 %v519
        %v568 = vunpack.c.h.b16 %v519
        %v569 = vunpack.c.l.b16 %v520
        %v570 = vunpack.c.h.b16 %v520
        %v571 = vunpack.c.l.b16 %v521
        %v572 = vunpack.c.h.b16 %v521
        %v573 = vunpack.c.l.b16 %v522
        %v574 = vunpack.c.h.b16 %v522
        %v575 = vunpack.c.l.b16 %v523
        %v576 = vunpack.c.h.b16 %v523
        %v577 = vunpack.c.l.b16 %v524
        %v578 = vunpack.c.h.b16 %v524
        %v579 = vunpack.c.l.b16 %v525
        %v580 = vunpack.c.h.b16 %v525
        %v581 = vunpack.c.l.b16 %v526
        %v582 = vunpack.c.h.b16 %v526
        %v583 = vunpack.c.l.b16 %v527
        %v584 = vunpack.c.h.b16 %v527
        %v585 = vunpack.c.l.b16 %v528
        %v586 = vunpack.c.h.b16 %v528
        %v587 = vunpack.c.l.b16 %v529
        %v588 = vunpack.c.h.b16 %v529
        %v589 = vunpack.c.l.b16 %v530
        %v590 = vunpack.c.h.b16 %v530
        %v591 = vpack.c.b16 %v561, %v559
        %v592 = vpack.c.b16 %v562, %v560
        %v593 = vpack.c.b16 %v565, %v563
        %v594 = vpack.c.b16 %v566, %v564
        %v595 = vpack.c.b16 %v569, %v567
        %v596 = vpack.c.b16 %v570, %v568
        %v597 = vpack.c.b16 %v573, %v571
        %v598 = vpack.c.b16 %v574, %v572
        %v599 = vpack.c.b16 %v577, %v575
        %v600 = vpack.c.b16 %v578, %v576
        %v601 = vpack.c.b16 %v581, %v579
        %v602 = vpack.c.b16 %v582, %v580
        %v603 = vpack.c.b16 %v585, %v583
        %v604 = vpack.c.b16 %v586, %v584
        %v605 = vpack.c.b16 %v589, %v587
        %v606 = vpack.c.b16 %v590, %v588
        %623 = vmatprep.subr.bf16.mxu0 %v592
        %624 = vmatpush1.bf16.msra.mxu0 %v591
        %625 = vmatprep.subr.bf16.mxu0 %v594
        %626 = vmatpush1.bf16.msra.mxu0 %v593
        %627 = vmatprep.subr.bf16.mxu0 %v596
        %628 = vmatpush1.bf16.msra.mxu0 %v595
        %629 = vmatprep.subr.bf16.mxu0 %v598
        %630 = vmatpush1.bf16.msra.mxu0 %v597
        %631 = vmatprep.subr.bf16.mxu0 %v600
        %632 = vmatpush1.bf16.msra.mxu0 %v599
        %633 = vmatprep.subr.bf16.mxu0 %v602
        %634 = vmatpush1.bf16.msra.mxu0 %v601
        %635 = vmatprep.subr.bf16.mxu0 %v604
        %636 = vmatpush1.bf16.msra.mxu0 %v603
        %637 = vmatprep.subr.bf16.mxu0 %v606
        %638 = vmatpush1.bf16.msra.mxu0 %v605
        %639 = vmatprep.subr.bf16.mxu0 0
        %640 = vmatpush1.bf16.msra.mxu0 0
        %641 = vmatprep.subr.bf16.mxu0 0
        %642 = vmatpush1.bf16.msra.mxu0 0
        %643 = vmatprep.subr.bf16.mxu0 0
        %644 = vmatpush1.bf16.msra.mxu0 0
        %645 = vmatprep.subr.bf16.mxu0 0
        %646 = vmatpush1.bf16.msra.mxu0 0
        %647 = vmatprep.subr.bf16.mxu0 0
        %648 = vmatpush1.bf16.msra.mxu0 0
        %649 = vmatprep.subr.bf16.mxu0 0
        %650 = vmatpush1.bf16.msra.mxu0 0
        %651 = vmatprep.subr.bf16.mxu0 0
        %652 = vmatpush1.bf16.msra.mxu0 0
        %653 = vmatprep.subr.bf16.mxu0 0
        %654 = vmatpush1.bf16.msra.mxu0 0
        %655 = vmatprep.mubr.bf16.mxu0 0
        %656 = vmatmul.mubr.bf16.gmra.mrb[0].mxu0 %v514
        %v657 = vpop.f32.mrb[0].mxu0
        %v658 = vadd.f32 %v536, %v657
        %v659 = vpop.f32.mrb[0].mxu0
        %v660 = vadd.f32 %v540, %v659
        %v661 = vpop.f32.mrb[0].mxu0
        %v662 = vadd.f32 %v536, %v661
        %v663 = vpop.f32.mrb[0].mxu0
        %v664 = vadd.f32 %v540, %v663
        %665 = vdwg.mxu0
        %v666 = vmax.f32 %v658, 0.0
        %v667 = vmax.f32 %v660, 0.0
        %v668 = vmax.f32 %v662, 0.0
        %v669 = vmax.f32 %v664, 0.0
        %v670 = vpack.c.bf16 %v668, %v666
        %v671 = vpack.c.bf16 %v669, %v667
        %v672 = vld [vmem:[#allocation8] sm:$0xf]
        %v673 = vld [vmem:[#allocation8 + $0x4] sm:$0xf]
        %v674 = vld [vmem:[#allocation8 + $0x8] sm:$0xf]
        %v675 = vld [vmem:[#allocation8 + $0xc] sm:$0xf]
        %v676 = vld [vmem:[#allocation8 + $0x10] sm:$0xf]
        %v677 = vld [vmem:[#allocation8 + $0x14] sm:$0xf]
        %v678 = vld [vmem:[#allocation8 + $0x18] sm:$0xf]
        %v679 = vld [vmem:[#allocation8 + $0x1c] sm:$0xf]
        %v680 = vld [vmem:[#allocation8 + $0x20] sm:$0xf]
        %v681 = vld [vmem:[#allocation8 + $0x24] sm:$0xf]
        %v682 = vld [vmem:[#allocation8 + $0x28] sm:$0xf]
        %v683 = vld [vmem:[#allocation8 + $0x2c] sm:$0xf]
        %v684 = vld [vmem:[#allocation8 + $0x30] sm:$0xf]
        %v685 = vld [vmem:[#allocation8 + $0x34] sm:$0xf]
        %v686 = vld [vmem:[#allocation8 + $0x38] sm:$0xf]
        %v687 = vld [vmem:[#allocation8 + $0x3c] sm:$0xf]
        %v688 = vld [vmem:[#allocation8 + $0x40] sm:$0xf]
        %v689 = vld [vmem:[#allocation8 + $0x44] sm:$0xf]
        %v690 = vld [vmem:[#allocation8 + $0x48] sm:$0xf]
        %v691 = vld [vmem:[#allocation8 + $0x4c] sm:$0xf]
        %v692 = vld [vmem:[#allocation8 + $0x50] sm:$0xf]
        %v693 = vld [vmem:[#allocation8 + $0x54] sm:$0xf]
        %v694 = vld [vmem:[#allocation8 + $0x58] sm:$0xf]
        %v695 = vld [vmem:[#allocation8 + $0x5c] sm:$0xf]
        %v696 = vld [vmem:[#allocation8 + $0x60] sm:$0xf]
        %v697 = vld [vmem:[#allocation8 + $0x64] sm:$0xf]
        %v698 = vld [vmem:[#allocation8 + $0x68] sm:$0xf]
        %v699 = vld [vmem:[#allocation8 + $0x6c] sm:$0xf]
        %v700 = vld [vmem:[#allocation8 + $0x70] sm:$0xf]
        %v701 = vld [vmem:[#allocation8 + $0x74] sm:$0xf]
        %v702 = vld [vmem:[#allocation8 + $0x78] sm:$0xf]
        %v703 = vld [vmem:[#allocation8 + $0x7c] sm:$0xf]
        %v704 = vld [vmem:[%s6] sm:$0x1]
        %v706 = vlaneseq
        %v707 = vshrl.u32 %v706, 7
        %v708 = vsub.s32 0, %v707
        %v709 = vrot.slane %v704, %v708
        %v743 = vunpack.c.l.b16 %v672
        %v744 = vunpack.c.l.b16 %v673
        %v745 = vunpack.c.l.b16 %v674
        %v746 = vunpack.c.l.b16 %v675
        %v747 = vunpack.c.l.b16 %v676
        %v748 = vunpack.c.l.b16 %v677
        %v749 = vunpack.c.l.b16 %v678
        %v750 = vunpack.c.l.b16 %v679
        %v751 = vunpack.c.l.b16 %v680
        %v752 = vunpack.c.l.b16 %v681
        %v753 = vunpack.c.l.b16 %v682
        %v754 = vunpack.c.l.b16 %v683
        %v755 = vunpack.c.l.b16 %v684
        %v756 = vunpack.c.l.b16 %v685
        %v757 = vunpack.c.l.b16 %v686
        %v758 = vunpack.c.l.b16 %v687
        %v759 = vunpack.c.l.b16 %v688
        %v760 = vunpack.c.l.b16 %v689
        %v761 = vunpack.c.l.b16 %v690
        %v762 = vunpack.c.l.b16 %v691
        %v763 = vunpack.c.l.b16 %v692
        %v764 = vunpack.c.l.b16 %v693
        %v765 = vunpack.c.l.b16 %v694
        %v766 = vunpack.c.l.b16 %v695
        %v767 = vunpack.c.l.b16 %v696
        %v768 = vunpack.c.l.b16 %v697
        %v769 = vunpack.c.l.b16 %v698
        %v770 = vunpack.c.l.b16 %v699
        %v771 = vunpack.c.l.b16 %v700
        %v772 = vunpack.c.l.b16 %v701
        %v773 = vunpack.c.l.b16 %v702
        %v774 = vunpack.c.l.b16 %v703
        %v775 = vpack.c.b16 %v744, %v743
        %v776 = vpack.c.b16 %v746, %v745
        %v777 = vpack.c.b16 %v748, %v747
        %v778 = vpack.c.b16 %v750, %v749
        %v779 = vpack.c.b16 %v752, %v751
        %v780 = vpack.c.b16 %v754, %v753
        %v781 = vpack.c.b16 %v756, %v755
        %v782 = vpack.c.b16 %v758, %v757
        %v783 = vpack.c.b16 %v760, %v759
        %v784 = vpack.c.b16 %v762, %v761
        %v785 = vpack.c.b16 %v764, %v763
        %v786 = vpack.c.b16 %v766, %v765
        %v787 = vpack.c.b16 %v768, %v767
        %v788 = vpack.c.b16 %v770, %v769
        %v789 = vpack.c.b16 %v772, %v771
        %v790 = vpack.c.b16 %v774, %v773
        %807 = vmatprep.subr.bf16.mxu0 0
        %808 = vmatpush1.bf16.msra.mxu0 %v775
        %809 = vmatprep.subr.bf16.mxu0 0
        %810 = vmatpush1.bf16.msra.mxu0 %v776
        %811 = vmatprep.subr.bf16.mxu0 0
        %812 = vmatpush1.bf16.msra.mxu0 %v777
        %813 = vmatprep.subr.bf16.mxu0 0
        %814 = vmatpush1.bf16.msra.mxu0 %v778
        %815 = vmatprep.subr.bf16.mxu0 0
        %816 = vmatpush1.bf16.msra.mxu0 %v779
        %817 = vmatprep.subr.bf16.mxu0 0
        %818 = vmatpush1.bf16.msra.mxu0 %v780
        %819 = vmatprep.subr.bf16.mxu0 0
        %820 = vmatpush1.bf16.msra.mxu0 %v781
        %821 = vmatprep.subr.bf16.mxu0 0
        %822 = vmatpush1.bf16.msra.mxu0 %v782
        %823 = vmatprep.subr.bf16.mxu0 0
        %824 = vmatpush1.bf16.msra.mxu0 %v783
        %825 = vmatprep.subr.bf16.mxu0 0
        %826 = vmatpush1.bf16.msra.mxu0 %v784
        %827 = vmatprep.subr.bf16.mxu0 0
        %828 = vmatpush1.bf16.msra.mxu0 %v785
        %829 = vmatprep.subr.bf16.mxu0 0
        %830 = vmatpush1.bf16.msra.mxu0 %v786
        %831 = vmatprep.subr.bf16.mxu0 0
        %832 = vmatpush1.bf16.msra.mxu0 %v787
        %833 = vmatprep.subr.bf16.mxu0 0
        %834 = vmatpush1.bf16.msra.mxu0 %v788
        %835 = vmatprep.subr.bf16.mxu0 0
        %836 = vmatpush1.bf16.msra.mxu0 %v789
        %837 = vmatprep.subr.bf16.mxu0 0
        %838 = vmatpush1.bf16.msra.mxu0 %v790
        %839 = vmatprep.mubr.bf16.mxu0 %v671
        %840 = vmatmul.mubr.bf16.gmra.mrb[0].mxu0 %v670
        %v841 = vpop.f32.mrb[0].mxu0
        %v842 = vadd.f32 %v709, %v841
        %v843 = vpop.f32.mrb[0].mxu0
        %v844 = vpop.f32.mrb[0].mxu0
        %v845 = vadd.f32 %v709, %v844
        %v846 = vpop.f32.mrb[0].mxu0
        %847 = vdwg.mxu0
        %v849 = vlaneseq
        %v850 = vshrl.u32 %v849, 7
        %v851 = vsub.s32 0, %v850
        %v852 = vrot.slane %v511, %v851
        %v854 = vmul.f32 %v852, %v512
        %v855 = vmul.f32 %v852, %v513
        %v856 = vadd.f32 %v854, %v842
        %v857 = vadd.f32 %v855, %v845
        %v858 = vpack.c.bf16 %v857, %v856
        %v859 = vld [vmem:[#allocation10] sm:$0xff]
        %v860 = vld [vmem:[#allocation10 + $0x8] sm:$0xff]
        %v861 = vld [vmem:[#allocation10 + $0x10] sm:$0xff]
        %v862 = vld [vmem:[#allocation10 + $0x18] sm:$0xff]
        %v863 = vld [vmem:[#allocation10 + $0x20] sm:$0xff]
        %v864 = vld [vmem:[#allocation10 + $0x28] sm:$0xff]
        %v865 = vld [vmem:[#allocation10 + $0x30] sm:$0xff]
        %v866 = vld [vmem:[#allocation10 + $0x38] sm:$0xff]
        %v867 = vld [vmem:[#allocation10 + $0x40] sm:$0xff]
        %v868 = vld [vmem:[#allocation10 + $0x48] sm:$0xff]
        %v869 = vld [vmem:[#allocation10 + $0x50] sm:$0xff]
        %v870 = vld [vmem:[#allocation10 + $0x58] sm:$0xff]
        %v871 = vld [vmem:[#allocation10 + $0x60] sm:$0xff]
        %v872 = vld [vmem:[#allocation10 + $0x68] sm:$0xff]
        %v873 = vld [vmem:[#allocation10 + $0x70] sm:$0xff]
        %v874 = vld [vmem:[#allocation10 + $0x78] sm:$0xff]
        %v875 = vld [vmem:[%s8] sm:$0x3]
        %v877 = vlaneseq
        %v878 = vshrl.u32 %v877, 7
        %v879 = vsub.s32 0, %v878
        %v880 = vrot.slane %v875, %v879
        %v881 = vlaneseq
        %v882 = vshrl.u32 %v881, 7
        %v883 = vsub.s32 1, %v882
        %v884 = vrot.slane %v875, %v883
        %v903 = vunpack.c.l.b16 %v859
        %v904 = vunpack.c.h.b16 %v859
        %v905 = vunpack.c.l.b16 %v860
        %v906 = vunpack.c.h.b16 %v860
        %v907 = vunpack.c.l.b16 %v861
        %v908 = vunpack.c.h.b16 %v861
        %v909 = vunpack.c.l.b16 %v862
        %v910 = vunpack.c.h.b16 %v862
        %v911 = vunpack.c.l.b16 %v863
        %v912 = vunpack.c.h.b16 %v863
        %v913 = vunpack.c.l.b16 %v864
        %v914 = vunpack.c.h.b16 %v864
        %v915 = vunpack.c.l.b16 %v865
        %v916 = vunpack.c.h.b16 %v865
        %v917 = vunpack.c.l.b16 %v866
        %v918 = vunpack.c.h.b16 %v866
        %v919 = vunpack.c.l.b16 %v867
        %v920 = vunpack.c.h.b16 %v867
        %v921 = vunpack.c.l.b16 %v868
        %v922 = vunpack.c.h.b16 %v868
        %v923 = vunpack.c.l.b16 %v869
        %v924 = vunpack.c.h.b16 %v869
        %v925 = vunpack.c.l.b16 %v870
        %v926 = vunpack.c.h.b16 %v870
        %v927 = vunpack.c.l.b16 %v871
        %v928 = vunpack.c.h.b16 %v871
        %v929 = vunpack.c.l.b16 %v872
        %v930 = vunpack.c.h.b16 %v872
        %v931 = vunpack.c.l.b16 %v873
        %v932 = vunpack.c.h.b16 %v873
        %v933 = vunpack.c.l.b16 %v874
        %v934 = vunpack.c.h.b16 %v874
        %v935 = vpack.c.b16 %v905, %v903
        %v936 = vpack.c.b16 %v906, %v904
        %v937 = vpack.c.b16 %v909, %v907
        %v938 = vpack.c.b16 %v910, %v908
        %v939 = vpack.c.b16 %v913, %v911
        %v940 = vpack.c.b16 %v914, %v912
        %v941 = vpack.c.b16 %v917, %v915
        %v942 = vpack.c.b16 %v918, %v916
        %v943 = vpack.c.b16 %v921, %v919
        %v944 = vpack.c.b16 %v922, %v920
        %v945 = vpack.c.b16 %v925, %v923
        %v946 = vpack.c.b16 %v926, %v924
        %v947 = vpack.c.b16 %v929, %v927
        %v948 = vpack.c.b16 %v930, %v928
        %v949 = vpack.c.b16 %v933, %v931
        %v950 = vpack.c.b16 %v934, %v932
        %967 = vmatprep.subr.bf16.mxu0 %v936
        %968 = vmatpush1.bf16.msra.mxu0 %v935
        %969 = vmatprep.subr.bf16.mxu0 %v938
        %970 = vmatpush1.bf16.msra.mxu0 %v937
        %971 = vmatprep.subr.bf16.mxu0 %v940
        %972 = vmatpush1.bf16.msra.mxu0 %v939
        %973 = vmatprep.subr.bf16.mxu0 %v942
        %974 = vmatpush1.bf16.msra.mxu0 %v941
        %975 = vmatprep.subr.bf16.mxu0 %v944
        %976 = vmatpush1.bf16.msra.mxu0 %v943
        %977 = vmatprep.subr.bf16.mxu0 %v946
        %978 = vmatpush1.bf16.msra.mxu0 %v945
        %979 = vmatprep.subr.bf16.mxu0 %v948
        %980 = vmatpush1.bf16.msra.mxu0 %v947
        %981 = vmatprep.subr.bf16.mxu0 %v950
        %982 = vmatpush1.bf16.msra.mxu0 %v949
        %983 = vmatprep.subr.bf16.mxu0 0
        %984 = vmatpush1.bf16.msra.mxu0 0
        %985 = vmatprep.subr.bf16.mxu0 0
        %986 = vmatpush1.bf16.msra.mxu0 0
        %987 = vmatprep.subr.bf16.mxu0 0
        %988 = vmatpush1.bf16.msra.mxu0 0
        %989 = vmatprep.subr.bf16.mxu0 0
        %990 = vmatpush1.bf16.msra.mxu0 0
        %991 = vmatprep.subr.bf16.mxu0 0
        %992 = vmatpush1.bf16.msra.mxu0 0
        %993 = vmatprep.subr.bf16.mxu0 0
        %994 = vmatpush1.bf16.msra.mxu0 0
        %995 = vmatprep.subr.bf16.mxu0 0
        %996 = vmatpush1.bf16.msra.mxu0 0
        %997 = vmatprep.subr.bf16.mxu0 0
        %998 = vmatpush1.bf16.msra.mxu0 0
        %999 = vmatprep.mubr.bf16.mxu0 0
        %1000 = vmatmul.mubr.bf16.gmra.mrb[0].mxu0 %v858
        %v1001 = vpop.f32.mrb[0].mxu0
        %v1002 = vadd.f32 %v880, %v1001
        %v1003 = vpop.f32.mrb[0].mxu0
        %v1004 = vadd.f32 %v884, %v1003
        %v1005 = vpop.f32.mrb[0].mxu0
        %v1006 = vadd.f32 %v880, %v1005
        %v1007 = vpop.f32.mrb[0].mxu0
        %v1008 = vadd.f32 %v884, %v1007
        %1009 = vdwg.mxu0
        %v1010 = vmax.f32 %v1002, 0.0
        %v1011 = vmax.f32 %v1004, 0.0
        %v1012 = vmax.f32 %v1006, 0.0
        %v1013 = vmax.f32 %v1008, 0.0
        %v1014 = vpack.c.bf16 %v1012, %v1010
        %v1015 = vpack.c.bf16 %v1013, %v1011
        %v1016 = vld [vmem:[#allocation11] sm:$0xf]
        %v1017 = vld [vmem:[#allocation11 + $0x4] sm:$0xf]
        %v1018 = vld [vmem:[#allocation11 + $0x8] sm:$0xf]
        %v1019 = vld [vmem:[#allocation11 + $0xc] sm:$0xf]
        %v1020 = vld [vmem:[#allocation11 + $0x10] sm:$0xf]
        %v1021 = vld [vmem:[#allocation11 + $0x14] sm:$0xf]
        %v1022 = vld [vmem:[#allocation11 + $0x18] sm:$0xf]
        %v1023 = vld [vmem:[#allocation11 + $0x1c] sm:$0xf]
        %v1024 = vld [vmem:[#allocation11 + $0x20] sm:$0xf]
        %v1025 = vld [vmem:[#allocation11 + $0x24] sm:$0xf]
        %v1026 = vld [vmem:[#allocation11 + $0x28] sm:$0xf]
        %v1027 = vld [vmem:[#allocation11 + $0x2c] sm:$0xf]
        %v1028 = vld [vmem:[#allocation11 + $0x30] sm:$0xf]
        %v1029 = vld [vmem:[#allocation11 + $0x34] sm:$0xf]
        %v1030 = vld [vmem:[#allocation11 + $0x38] sm:$0xf]
        %v1031 = vld [vmem:[#allocation11 + $0x3c] sm:$0xf]
        %v1032 = vld [vmem:[#allocation11 + $0x40] sm:$0xf]
        %v1033 = vld [vmem:[#allocation11 + $0x44] sm:$0xf]
        %v1034 = vld [vmem:[#allocation11 + $0x48] sm:$0xf]
        %v1035 = vld [vmem:[#allocation11 + $0x4c] sm:$0xf]
        %v1036 = vld [vmem:[#allocation11 + $0x50] sm:$0xf]
        %v1037 = vld [vmem:[#allocation11 + $0x54] sm:$0xf]
        %v1038 = vld [vmem:[#allocation11 + $0x58] sm:$0xf]
        %v1039 = vld [vmem:[#allocation11 + $0x5c] sm:$0xf]
        %v1040 = vld [vmem:[#allocation11 + $0x60] sm:$0xf]
        %v1041 = vld [vmem:[#allocation11 + $0x64] sm:$0xf]
        %v1042 = vld [vmem:[#allocation11 + $0x68] sm:$0xf]
        %v1043 = vld [vmem:[#allocation11 + $0x6c] sm:$0xf]
        %v1044 = vld [vmem:[#allocation11 + $0x70] sm:$0xf]
        %v1045 = vld [vmem:[#allocation11 + $0x74] sm:$0xf]
        %v1046 = vld [vmem:[#allocation11 + $0x78] sm:$0xf]
        %v1047 = vld [vmem:[#allocation11 + $0x7c] sm:$0xf]
        %v1048 = vld [vmem:[%s10] sm:$0x1]
        %v1050 = vlaneseq
        %v1051 = vshrl.u32 %v1050, 7
        %v1052 = vsub.s32 0, %v1051
        %v1053 = vrot.slane %v1048, %v1052
        %v1087 = vunpack.c.l.b16 %v1016
        %v1088 = vunpack.c.l.b16 %v1017
        %v1089 = vunpack.c.l.b16 %v1018
        %v1090 = vunpack.c.l.b16 %v1019
        %v1091 = vunpack.c.l.b16 %v1020
        %v1092 = vunpack.c.l.b16 %v1021
        %v1093 = vunpack.c.l.b16 %v1022
        %v1094 = vunpack.c.l.b16 %v1023
        %v1095 = vunpack.c.l.b16 %v1024
        %v1096 = vunpack.c.l.b16 %v1025
        %v1097 = vunpack.c.l.b16 %v1026
        %v1098 = vunpack.c.l.b16 %v1027
        %v1099 = vunpack.c.l.b16 %v1028
        %v1100 = vunpack.c.l.b16 %v1029
        %v1101 = vunpack.c.l.b16 %v1030
        %v1102 = vunpack.c.l.b16 %v1031
        %v1103 = vunpack.c.l.b16 %v1032
        %v1104 = vunpack.c.l.b16 %v1033
        %v1105 = vunpack.c.l.b16 %v1034
        %v1106 = vunpack.c.l.b16 %v1035
        %v1107 = vunpack.c.l.b16 %v1036
        %v1108 = vunpack.c.l.b16 %v1037
        %v1109 = vunpack.c.l.b16 %v1038
        %v1110 = vunpack.c.l.b16 %v1039
        %v1111 = vunpack.c.l.b16 %v1040
        %v1112 = vunpack.c.l.b16 %v1041
        %v1113 = vunpack.c.l.b16 %v1042
        %v1114 = vunpack.c.l.b16 %v1043
        %v1115 = vunpack.c.l.b16 %v1044
        %v1116 = vunpack.c.l.b16 %v1045
        %v1117 = vunpack.c.l.b16 %v1046
        %v1118 = vunpack.c.l.b16 %v1047
        %v1119 = vpack.c.b16 %v1088, %v1087
        %v1120 = vpack.c.b16 %v1090, %v1089
        %v1121 = vpack.c.b16 %v1092, %v1091
        %v1122 = vpack.c.b16 %v1094, %v1093
        %v1123 = vpack.c.b16 %v1096, %v1095
        %v1124 = vpack.c.b16 %v1098, %v1097
        %v1125 = vpack.c.b16 %v1100, %v1099
        %v1126 = vpack.c.b16 %v1102, %v1101
        %v1127 = vpack.c.b16 %v1104, %v1103
        %v1128 = vpack.c.b16 %v1106, %v1105
        %v1129 = vpack.c.b16 %v1108, %v1107
        %v1130 = vpack.c.b16 %v1110, %v1109
        %v1131 = vpack.c.b16 %v1112, %v1111
        %v1132 = vpack.c.b16 %v1114, %v1113
        %v1133 = vpack.c.b16 %v1116, %v1115
        %v1134 = vpack.c.b16 %v1118, %v1117
        %1151 = vmatprep.subr.bf16.mxu0 0
        %1152 = vmatpush1.bf16.msra.mxu0 %v1119
        %1153 = vmatprep.subr.bf16.mxu0 0
        %1154 = vmatpush1.bf16.msra.mxu0 %v1120
        %1155 = vmatprep.subr.bf16.mxu0 0
        %1156 = vmatpush1.bf16.msra.mxu0 %v1121
        %1157 = vmatprep.subr.bf16.mxu0 0
        %1158 = vmatpush1.bf16.msra.mxu0 %v1122
        %1159 = vmatprep.subr.bf16.mxu0 0
        %1160 = vmatpush1.bf16.msra.mxu0 %v1123
        %1161 = vmatprep.subr.bf16.mxu0 0
        %1162 = vmatpush1.bf16.msra.mxu0 %v1124
        %1163 = vmatprep.subr.bf16.mxu0 0
        %1164 = vmatpush1.bf16.msra.mxu0 %v1125
        %1165 = vmatprep.subr.bf16.mxu0 0
        %1166 = vmatpush1.bf16.msra.mxu0 %v1126
        %1167 = vmatprep.subr.bf16.mxu0 0
        %1168 = vmatpush1.bf16.msra.mxu0 %v1127
        %1169 = vmatprep.subr.bf16.mxu0 0
        %1170 = vmatpush1.bf16.msra.mxu0 %v1128
        %1171 = vmatprep.subr.bf16.mxu0 0
        %1172 = vmatpush1.bf16.msra.mxu0 %v1129
        %1173 = vmatprep.subr.bf16.mxu0 0
        %1174 = vmatpush1.bf16.msra.mxu0 %v1130
        %1175 = vmatprep.subr.bf16.mxu0 0
        %1176 = vmatpush1.bf16.msra.mxu0 %v1131
        %1177 = vmatprep.subr.bf16.mxu0 0
        %1178 = vmatpush1.bf16.msra.mxu0 %v1132
        %1179 = vmatprep.subr.bf16.mxu0 0
        %1180 = vmatpush1.bf16.msra.mxu0 %v1133
        %1181 = vmatprep.subr.bf16.mxu0 0
        %1182 = vmatpush1.bf16.msra.mxu0 %v1134
        %1183 = vmatprep.mubr.bf16.mxu0 %v1015
        %1184 = vmatmul.mubr.bf16.gmra.mrb[0].mxu0 %v1014
        %v1185 = vpop.f32.mrb[0].mxu0
        %v1186 = vadd.f32 %v1053, %v1185
        %v1187 = vpop.f32.mrb[0].mxu0
        %v1188 = vpop.f32.mrb[0].mxu0
        %v1189 = vadd.f32 %v1053, %v1188
        %v1190 = vpop.f32.mrb[0].mxu0
        %1191 = vdwg.mxu0
        %v1192 = vadd.f32 %v512, %v842
        %v1193 = vadd.f32 %v513, %v845
        %v1194 = vadd.f32 %v1192, %v1186
        %v1195 = vadd.f32 %v1193, %v1189
        %1196 = vst [vmem:[%s502] sm:$0xff] %v1194
        %1197 = vst [vmem:[%s502 + $0x8] sm:$0xff] %v1195
        %s1198 = sand.u32 %s282, 1
        %s1199 = scalar_lea.sflag [#allocation4], %s1198
        %s1200 = sand.u32 %s282, 1
        %s1201 = smul.addr %s1200, 16
        %s1202 = scalar_lea.vmem [#allocation13], %s1201
        // Predicated region
        $region89: #{tpu_custom_call.1} parent=63 // pred_check
          %p1203 = pneg %p292
        $region90: #{tpu_custom_call.1} parent=63 // pred_check_branch
          %1205 = sbr.rel (%p1203) target = $region92
        $region91: #{tpu_custom_call.1} parent=63 // pred_region
          %s1206 = smul.u32 2, %s33
          %s1208 = ssub.s32 256, 256
          %1209 = vsyncadd %s1199, %s1208
          %s1210 = smul.addr %s1206, 128
          %s1211 = scalar_lea.hbm %s11, %s1210
          %s1212 = sshll.u32 %s1202, 4
          %s1213 = int_to_ptr.vmem [resolvable:$true] %s1212
          %1218 = dma.vmem_to_hbm [thread:$0]  %s1213, 256, %s1211, %s1199, 128, 128, 8
        $region92: #{tpu_custom_call.1} parent=63 // pred_fallthru
          _
      $region64: #{tpu_custom_call.1} parent=5 // pred_fallthru
        _
      %p1219 = scmp.le.s32.totalorder 2, %s28
      // Predicated region
      $region93: #{tpu_custom_call.1} parent=5 // pred_check
        %p1220 = pneg %p1219
      $region94: #{tpu_custom_call.1} parent=5 // pred_check_branch
        %1222 = sbr.rel (%p1220) target = $region96
      $region95: #{tpu_custom_call.1} parent=5 // pred_region
        %s1223 = ssub.s32 %s28, 2
        // Predicated region
        $region97: #{tpu_custom_call.1} parent=95 // pred_check
          %p1224 = pneg %p298
        $region98: #{tpu_custom_call.1} parent=95 // pred_check_branch
          %1226 = sbr.rel (%p1224) target = $region100
        $region99: #{tpu_custom_call.1} parent=95 // pred_region
          %s1227 = sand.u32 %s283, 1
          %s1228 = scalar_lea.sflag [#allocation4], %s1227
          %s1229 = sand.u32 %s283, 1
          %s1230 = smul.addr %s1229, 16
          %s1231 = scalar_lea.vmem [#allocation13], %s1230
          %1232 = dma.done %s1228, 256
        $region100: #{tpu_custom_call.1} parent=95 // pred_fallthru
          _
      $region96: #{tpu_custom_call.1} parent=5 // pred_fallthru
        _
    $region6: #{tpu_custom_call.1} parent=1 // loop_footer
      %s32 = sadd.s32 1, %s28
    $region7: #{tpu_custom_call.1} parent=1 // loop_footer_branch
      %27 = sbr.rel target = $region3
    $region8: #{tpu_custom_call.1} parent=1 // loop_exit
      _
    %1233 = vsyncpa [#allocation3], 1
    %s1234 = scalar_lea.sflag [#allocation3], 1
    %1235 = vsyncpa %s1234, 1
    %1236 = vsyncpa [#allocation6], 1
    %s1237 = scalar_lea.sflag [#allocation6], 1
    %1238 = vsyncpa %s1237, 1
    %1239 = vsyncpa [#allocation9], 1
    %1240 = vsyncpa [#allocation12], 1
    %1241 = vsyncpa [#allocation4], 1
    %s1242 = scalar_lea.sflag [#allocation4], 1
    %1243 = vsyncpa %s1242, 1

</llo_original>
